<compile_context>
chip_gen: v5e
topology: v5e:2x2
jax: 0.10.0
libtpu: 0.0.40
codegen_flags: <defaults>
</compile_context>

<pallas_src>
import functools

import numpy as np
import jax
import jax.numpy as jnp
from jax.experimental import pallas as pl
from jax.experimental.pallas import tpu as pltpu


def periodic_hann(nfft):
    # equivalent to torch.hann_window(nfft) (periodic=True default)
    n = np.arange(nfft, dtype=np.float64)
    return (0.5 - 0.5 * np.cos(2.0 * np.pi * n / nfft)).astype(np.float32)


def build_filters(nfft, ratio):
    # equivalent to the `filters` buffer built in LowPass.__init__
    nbins = nfft // 2 + 1
    f = np.ones((len(ratio), nbins), dtype=np.float32)
    for i, r in enumerate(ratio):
        f[i, int(nbins * r):] = 0.0
    return f


def _round_up(x, m):
    return ((x + m - 1) // m) * m


def _vmem_capacity_bytes():
    try:
        return int(pltpu.get_tpu_info().vmem_capacity_bytes)
    except Exception:
        return 64 << 20        # conservative: v7x per-TC VMEM (v5e/v6e have 128 MiB)


def _vmem_need_bytes(mb, kb, nk, nfft_pad):
    cbuf = 1 if nk == 1 else 2                      # constants single-buffered iff grid-invariant
    return (2 * mb * nfft_pad * 2                   # frame blocks (bf16, double-buffered)
            + 2 * mb * 4 + 2 * kb * 4               # cutoff + bin-index blocks (int32)
            + 2 * cbuf * nfft_pad * kb * 2          # C and A blocks (bf16)
            + 2 * mb * nfft_pad * 4                 # output blocks (f32, double-buffered)
            + (mb * nfft_pad * 4 if nk > 1 else 0)  # f32 accumulator scratch
            + mb * kb * 4)                          # masked-spectrum temporary


def _tile_plan(n_rows, nbins, nfft_pad, budget):
    """Pick (Mb, Kb, K_pad) so one grid step's working set fits the VMEM budget."""
    k_full = _round_up(2 * nbins, 128)
    # Row tile: aim for >=2 grid steps (v7x has 2 TensorCores); cap 256, or 512
    # on parts with large VMEM and plenty of rows (v5e/v6e).
    row_cap = 512 if (budget >= (80 << 20) and n_rows >= 1024) else 256
    mb = max(16, min(row_cap, _round_up(max((n_rows + 1) // 2, 16), 16)))
    while True:
        kb = k_full
        while True:
            k_pad = _round_up(2 * nbins, kb)
            nk = k_pad // kb
            need = _vmem_need_bytes(mb, kb, nk, nfft_pad)
            if need <= budget or kb == 128:
                break
            kb = max(128, _round_up(kb // 2, 128))
        if need <= budget or mb == 16:
            return mb, kb, k_pad
        mb = max(16, _round_up(mb // 2, 16))


def _lowpass_kernel(frames_ref, cut_ref, bin_ref, c_ref, a_ref, out_ref, *scratch,
                    multi_k):
    # frames_ref: (Mb, nfft_pad)  bf16 raw frames (analysis window folded into C)
    # cut_ref   : (Mb, 1)         int32 per-row cutoff bin index
    # bin_ref   : (1, Kb)         int32 bin index per lane (re/im halves share it)
    # c_ref     : (nfft_pad, Kb)  bf16 fused window + rfft slab  (re | im)
    # a_ref     : (Kb, nfft_pad)  bf16 fused irfft + synthesis-window slab
    # rfft slice: one MXU matmul (f32 accumulation)
    s = jnp.dot(frames_ref[...], c_ref[...], preferred_element_type=jnp.float32)
    # low-pass mask: single VPU compare + select against the per-row cutoff
    s = jnp.where(bin_ref[...] < cut_ref[...], s, 0.0)
    # irfft + synthesis window slice: second MXU matmul
    y = jnp.dot(s.astype(a_ref.dtype), a_ref[...], preferred_element_type=jnp.float32)
    if multi_k:
        acc_ref = scratch[0]
        k = pl.program_id(1)

        @pl.when(k == 0)
        def _():
            acc_ref[...] = jnp.zeros_like(acc_ref)

        acc_ref[...] += y

        @pl.when(k == pl.num_programs(1) - 1)
        def _():
            out_ref[...] = acc_ref[...]
    else:
        out_ref[...] = y


def lowpass_pallas(x, r, *, nfft, hop, window, filters):
    orig_shape = x.shape
    orig_dtype = x.dtype
    T = orig_shape[-1]
    xf = x.reshape(-1, T).astype(jnp.float32)
    B = xf.shape[0]
    nbins = nfft // 2 + 1
    n_frames = 1 + (T + nfft) // hop            # torch.stft(center=True) frame count
    l_full = nfft + (n_frames - 1) * hop
    nfft_pad = _round_up(nfft, 128)             # lane-dense frame / output columns

    # ---- glue: F.pad zeros, stft center reflect pad, framing (bf16 frames) ----
    xp = jnp.pad(xf, ((0, 0), (0, nfft)))
    xc = jnp.pad(xp, ((0, 0), (nfft // 2, nfft // 2)), mode="reflect")
    xc = xc.astype(jnp.bfloat16)                # halves gather read/write traffic
    idx = np.arange(n_frames)[:, None] * hop + np.arange(nfft)[None, :]
    frames = xc[:, idx].reshape(B * n_frames, nfft)         # (R, nfft), row-major

    # ---- VMEM-budget-aware tiling (generation aware via get_tpu_info) ----
    R = B * n_frames
    budget = int(0.8 * _vmem_capacity_bytes())
    Mb, Kb, K_pad = _tile_plan(R, nbins, nfft_pad, budget)
    nk = K_pad // Kb
    R_pad = _round_up(R, Mb)

    # ---- host constants: fused window + DFT slabs (bf16), bin-index row ----
    win64 = np.asarray(window, np.float64)
    n = np.arange(nfft, dtype=np.float64)
    kf = np.arange(nbins, dtype=np.float64)
    ang = 2.0 * np.pi * np.outer(n, kf) / nfft               # (nfft, nbins)
    ck = np.where((np.arange(nbins) == 0) | (np.arange(nbins) == nfft // 2),
                  1.0, 2.0)
    ang_inv = 2.0 * np.pi * np.outer(kf, n) / nfft           # (nbins, nfft)
    c_mat = np.zeros((nfft_pad, K_pad), np.float64)
    c_mat[:nfft, :nbins] = win64[:, None] * np.cos(ang)                  # Re(rfft)
    c_mat[:nfft, nbins:2 * nbins] = win64[:, None] * (-np.sin(ang))      # Im(rfft)
    a_mat = np.zeros((K_pad, nfft_pad), np.float64)
    a_mat[:nbins, :nfft] = (ck[:, None] * np.cos(ang_inv) / nfft) * win64[None, :]
    a_mat[nbins:2 * nbins, :nfft] = (-ck[:, None] * np.sin(ang_inv) / nfft) * win64[None, :]
    bin_idx = np.full((1, K_pad), np.iinfo(np.int32).max, np.int32)
    bin_idx[0, :nbins] = np.arange(nbins)
    bin_idx[0, nbins:2 * nbins] = np.arange(nbins)

    # per-row cutoff bins (count of ones in the selected filter row)
    cuts = np.asarray(filters, np.float32).sum(axis=1).astype(np.int32)
    cut_rows = jnp.repeat(jnp.asarray(cuts)[jnp.asarray(r, jnp.int32)], n_frames)

    frames = jnp.pad(frames, ((0, R_pad - R), (0, nfft_pad - nfft)))
    cut_rows = jnp.pad(cut_rows, (0, R_pad - R)).reshape(R_pad, 1)

    # inverse hann^2 overlap envelope: compile-time constant (reciprocal on host)
    env = np.zeros((l_full,), np.float64)
    np.add.at(env, idx.ravel(), np.tile(win64 ** 2, n_frames))
    inv_env = (1.0 / np.maximum(env, 1e-12)).astype(np.float32)[None, :]

    need = _vmem_need_bytes(Mb, Kb, nk, nfft_pad)
    vmem_limit = int(min(budget, max(2 * need, 16 << 20)))
    const_buf = pl.Buffered(1) if nk == 1 else pl.Buffered(2)

    kernel = functools.partial(_lowpass_kernel, multi_k=(nk > 1))
    scratch_shapes = [pltpu.VMEM((Mb, nfft_pad), jnp.float32)] if nk > 1 else []

    yw = pl.pallas_call(
        kernel,
        out_shape=jax.ShapeDtypeStruct((R_pad, nfft_pad), jnp.float32),
        grid=(R_pad // Mb, nk),
        in_specs=[
            pl.BlockSpec((Mb, nfft_pad), lambda i, k: (i, 0)),    # frame rows (bf16)
            pl.BlockSpec((Mb, 1), lambda i, k: (i, 0)),           # per-row cutoff bin
            pl.BlockSpec((1, Kb), lambda i, k: (0, k)),           # lane bin index
            pl.BlockSpec((nfft_pad, Kb), lambda i, k: (0, k),
                         pipeline_mode=const_buf),                # fused analysis slab
            pl.BlockSpec((Kb, nfft_pad), lambda i, k: (k, 0),
                         pipeline_mode=const_buf),                # fused synthesis slab
        ],
        out_specs=pl.BlockSpec((Mb, nfft_pad), lambda i, k: (i, 0)),
        scratch_shapes=scratch_shapes,
        compiler_params=pltpu.CompilerParams(
            dimension_semantics=("parallel", "arbitrary"),
            vmem_limit_bytes=vmem_limit),
    )(frames,
      cut_rows,
      jnp.asarray(bin_idx),
      jnp.asarray(c_mat.astype(np.float32)).astype(jnp.bfloat16),
      jnp.asarray(a_mat.astype(np.float32)).astype(jnp.bfloat16))

    # ---- glue: overlap-add (memory-bound scatter-add), 1/env, istft trim ----
    yw = yw[:R, :nfft].reshape(B, n_frames, nfft)
    ola = jnp.zeros((B, l_full), jnp.float32).at[:, idx].add(yw)
    out = ola * jnp.asarray(inv_env)
    out = out[:, nfft // 2: nfft // 2 + T]
    return out.reshape(orig_shape).astype(orig_dtype)


def lowpass_reference(x, r, *, nfft, hop, window, filters):
    # pure-JAX reference (FFT-based) mirroring torch.stft/istft semantics
    orig_shape = x.shape
    T = orig_shape[-1]
    xf = x.reshape(-1, T).astype(jnp.float32)
    B = xf.shape[0]
    n_frames = 1 + (T + nfft) // hop
    l_full = nfft + (n_frames - 1) * hop
    xp = jnp.pad(xf, ((0, 0), (0, nfft)))
    xc = jnp.pad(xp, ((0, 0), (nfft // 2, nfft // 2)), mode="reflect")
    idx = np.arange(n_frames)[:, None] * hop + np.arange(nfft)[None, :]
    frames = xc[:, idx]
    w = jnp.asarray(window)
    spec = jnp.fft.rfft(frames * w[None, None, :], axis=-1)
    spec = spec * jnp.asarray(filters)[r][:, None, :]
    y = jnp.fft.irfft(spec, n=nfft, axis=-1) * w[None, None, :]
    ola = jnp.zeros((B, l_full), jnp.float32).at[:, idx].add(y)
    env = jnp.zeros((l_full,), jnp.float32).at[idx.ravel()].add(
        jnp.tile(w ** 2, n_frames))
    out = ola / jnp.maximum(env, 1e-12)[None, :]
    return out[:, nfft // 2: nfft // 2 + T].reshape(orig_shape).astype(x.dtype)


if __name__ == "__main__":
    # small, demo-sized instantiation of LowPass(nfft=64, hop=16) (same ratio set)
    NFFT, HOP = 64, 16
    RATIO = (1 / 6, 1 / 3, 1 / 2, 2 / 3, 3 / 4, 4 / 5, 5 / 6, 1 / 1)
    window = periodic_hann(NFFT)
    filters = build_filters(NFFT, RATIO)

    key = jax.random.PRNGKey(0)
    x = jax.random.normal(key, (2, 4, 128), dtype=jnp.float32)      # (..., T)
    # one cutoff index per flattened (batch*channel) row, as the module expects
    r = jnp.arange(x.shape[0] * x.shape[1], dtype=jnp.int32) % len(RATIO)

    out = lowpass_pallas(x, r, nfft=NFFT, hop=HOP, window=window, filters=filters)
    out = jax.block_until_ready(out)

    ref = lowpass_reference(x, r, nfft=NFFT, hop=HOP, window=window, filters=filters)
    np.testing.assert_allclose(np.asarray(out), np.asarray(ref), rtol=5e-2, atol=5e-2)
    assert out.shape == x.shape and out.dtype == x.dtype
    print("KERNEL_OK")
</pallas_src>

<mosaic_0001>
module attributes {stable_mosaic.version = 11 : i64} {
  func.func @_lowpass_kernel(%arg0: i32, %arg1: i32, %arg2: memref<64x128xbf16, #tpu.memory_space<vmem>>, %arg3: memref<64x1xi32, #tpu.memory_space<vmem>>, %arg4: memref<1x128xi32, #tpu.memory_space<vmem>>, %arg5: memref<128x128xbf16, #tpu.memory_space<vmem>>, %arg6: memref<128x128xbf16, #tpu.memory_space<vmem>>, %arg7: memref<64x128xf32, #tpu.memory_space<vmem>>) attributes {dimension_semantics = [#tpu.dimension_semantics<parallel>, #tpu.dimension_semantics<arbitrary>], iteration_bounds = array<i64: 2, 1>, scalar_prefetch = 0 : i64, scratch_operands = 0 : i64, tpu.core_type = #tpu.core_type<tc>, window_params = [{transform_indices = @transform_0, window_bounds = array<i64: 64, 128>}, {transform_indices = @transform_1, window_bounds = array<i64: 64, 1>}, {transform_indices = @transform_2, window_bounds = array<i64: 1, 128>}, {pipeline_mode = #tpu.pipeline_mode<synchronous>, transform_indices = @transform_3, window_bounds = array<i64: 128, 128>}, {pipeline_mode = #tpu.pipeline_mode<synchronous>, transform_indices = @transform_4, window_bounds = array<i64: 128, 128>}, {transform_indices = @transform_5, window_bounds = array<i64: 64, 128>}]} {
    %c0 = arith.constant 0 : index
    %c0_0 = arith.constant 0 : index
    %0 = vector.load %arg2[%c0, %c0_0] : memref<64x128xbf16, #tpu.memory_space<vmem>>, vector<64x128xbf16>
    %c0_1 = arith.constant 0 : index
    %c0_2 = arith.constant 0 : index
    %1 = vector.load %arg5[%c0_1, %c0_2] : memref<128x128xbf16, #tpu.memory_space<vmem>>, vector<128x128xbf16>
    %cst = arith.constant dense<0.000000e+00> : vector<64x128xf32>
    %2 = tpu.matmul %0, %1, %cst {dimension_numbers = #tpu.dot_dimension_numbers<[1], [0], [0], [1], [0, 0, 1, 1], [], []>} : vector<64x128xbf16>, vector<128x128xbf16>, vector<64x128xf32> -> vector<64x128xf32>
    %c0_3 = arith.constant 0 : index
    %c0_4 = arith.constant 0 : index
    %3 = vector.load %arg4[%c0_3, %c0_4] : memref<1x128xi32, #tpu.memory_space<vmem>>, vector<1x128xi32>
    %c0_5 = arith.constant 0 : index
    %c0_6 = arith.constant 0 : index
    %4 = vector.load %arg3[%c0_5, %c0_6] : memref<64x1xi32, #tpu.memory_space<vmem>>, vector<64x1xi32>
    %5 = vector.broadcast %3 : vector<1x128xi32> to vector<64x128xi32>
    %6 = vector.broadcast %4 : vector<64x1xi32> to vector<64x128xi32>
    %7 = arith.cmpi slt, %5, %6 : vector<64x128xi32>
    %cst_7 = arith.constant 0.000000e+00 : f32
    %8 = vector.broadcast %cst_7 : f32 to vector<64x128xf32>
    %9 = arith.select %7, %2, %8 : vector<64x128xi1>, vector<64x128xf32>
    %10 = arith.truncf %9 : vector<64x128xf32> to vector<64x128xbf16>
    %c0_8 = arith.constant 0 : index
    %c0_9 = arith.constant 0 : index
    %11 = vector.load %arg6[%c0_8, %c0_9] : memref<128x128xbf16, #tpu.memory_space<vmem>>, vector<128x128xbf16>
    %cst_10 = arith.constant dense<0.000000e+00> : vector<64x128xf32>
    %12 = tpu.matmul %10, %11, %cst_10 {dimension_numbers = #tpu.dot_dimension_numbers<[1], [0], [0], [1], [0, 0, 1, 1], [], []>} : vector<64x128xbf16>, vector<128x128xbf16>, vector<64x128xf32> -> vector<64x128xf32>
    %c0_11 = arith.constant 0 : index
    %c0_12 = arith.constant 0 : index
    %13 = vector.load %arg7[%c0_11, %c0_12] : memref<64x128xf32, #tpu.memory_space<vmem>>, vector<64x128xf32>
    tpu.vector_store %arg7[%c0_11, %c0_12], %12 {strides = array<i32>} : memref<64x128xf32, #tpu.memory_space<vmem>>, vector<64x128xf32>,
    return
  }
  func.func @transform_0(%arg0: i32, %arg1: i32) -> (i32, i32) {
    %c0_i32 = arith.constant 0 : i32
    %c0_i32_0 = arith.constant 0 : i32
    return %arg0, %c0_i32 : i32, i32
  }
  func.func @transform_1(%arg0: i32, %arg1: i32) -> (i32, i32) {
    %c0_i32 = arith.constant 0 : i32
    %c0_i32_0 = arith.constant 0 : i32
    return %arg0, %c0_i32 : i32, i32
  }
  func.func @transform_2(%arg0: i32, %arg1: i32) -> (i32, i32) {
    %c0_i32 = arith.constant 0 : i32
    %c0_i32_0 = arith.constant 0 : i32
    return %c0_i32, %arg1 : i32, i32
  }
  func.func @transform_3(%arg0: i32, %arg1: i32) -> (i32, i32) {
    %c0_i32 = arith.constant 0 : i32
    %c0_i32_0 = arith.constant 0 : i32
    return %c0_i32, %arg1 : i32, i32
  }
  func.func @transform_4(%arg0: i32, %arg1: i32) -> (i32, i32) {
    %c0_i32 = arith.constant 0 : i32
    %c0_i32_0 = arith.constant 0 : i32
    return %arg1, %c0_i32 : i32, i32
  }
  func.func @transform_5(%arg0: i32, %arg1: i32) -> (i32, i32) {
    %c0_i32 = arith.constant 0 : i32
    %c0_i32_0 = arith.constant 0 : i32
    return %arg0, %c0_i32 : i32, i32
  }
}

</mosaic_0001>

<llo_original>
// kernel: tpu_custom_call.1
$region0: #{tpu_custom_call.1}
  #allocation0 [shape = 'u32[]', space=smem, size = 0x4, offset = 0x4, fixed_abs, tag = 'smem constant byte address 0x4 - core index']
  #allocation1 [shape = 'u32[72,128]{1,0:T(1,128)}', space=vmem, size = 0x9000, scoped, tag = 'internal scratch']
  %s0 = inlined_call_operand.vmem [shape: bf16[128,128], index: 0, kind: input, shape index: {}]
  %s1 = inlined_call_operand.vmem [shape: s32[128,1], index: 1, kind: input, shape index: {}]
  %s2 = inlined_call_operand.vmem [shape: s32[1,128], index: 2, kind: input, shape index: {}]
  %s3 = inlined_call_operand.vmem [shape: bf16[128,128], index: 3, kind: input, shape index: {}]
  %s4 = inlined_call_operand.hbm [shape: bf16[128,128], index: 4, kind: input, shape index: {}]
  %s5 = inlined_call_operand.hbm [shape: f32[128,128], index: 5, kind: output, shape index: {}]
  %s6 = sld [smem:[#allocation0]]
  $region57: #{tpu_custom_call.1} parent=0
    _
  %s8 = ssub.s32 1, %s6
  %s9 = scalar_select 0, %s8, %s6
  $region1: #{tpu_custom_call.1} parent=0
    #allocation2 [shape = 'u8[32768]{0}', space=vmem, size = 0x8000, scoped, tag = 'input window, operand 4, single buffered']
    #allocation3 [shape = 's32[2]{0}', space=sflag, size = 0x8, scoped, tag = 'scoped memory for tpu_custom_call.1']
    #allocation4 [shape = 's32[2]{0}', space=sflag, size = 0x8, scoped, tag = 'scoped memory for tpu_custom_call.1']
    #allocation5 [shape = 'u8[65536]{0}', space=vmem, size = 0x10000, scoped, tag = 'output window, operand 0']
    %10 = vsyncpa [#allocation3], 0
    %11 = vsyncpa [#allocation4], 0
    %s12 = scalar_lea.sflag [#allocation4], 1
    %13 = vsyncpa %s12, 0
    loop: start=0, step=1, limit=4
    $region2: #{tpu_custom_call.1} parent=1 // loop_pre_header
      _
    $region3: #{tpu_custom_call.1} parent=1 // loop_header
      %s15 = sphi 0, %s19
      %p16 = scmp.ge.s32.totalorder %s15, 4
      %s22 = sphi 0, %s34
      %s23 = sphi 0, %s30
      %s24 = sphi 0, %s22
      %s25 = sphi 0, %s23
      %s26 = sphi 0, %s24
      %s27 = sphi 0, %s25
      %s37 = sphi 0, %s39
      %s40 = sphi 0, %s37
      %s41 = sphi 0, %s40
      %s57 = sphi 0, %s41
      %s63 = sphi 0, %s65
      %s66 = sphi 0, %s63
      %s67 = sphi 0, %s66
      %s83 = sphi 0, %s67
      %s89 = sphi 0, %s91
      %s92 = sphi 0, %s89
      %s93 = sphi 0, %s92
      %s109 = sphi 0, %s93
      %s115 = sphi 0, %s117
      %s118 = sphi 0, %s115
      %s119 = sphi 0, %s118
      %s135 = sphi 0, %s119
      %s141 = sphi 0, %s143
      %s144 = sphi 0, %s141
      %s145 = sphi 0, %s144
      %s161 = sphi 0, %s145
      %s167 = sphi 0, %s169
      %s170 = sphi 0, %s167
      %s171 = sphi 0, %s170
      %s187 = sphi 0, %s171
    $region4: #{tpu_custom_call.1} parent=1 // loop_header_branch
      %18 = sbr.rel (%p16) target = $region8
    $region5: #{tpu_custom_call.1} parent=1 // loop_body
      %s20 = ssub.s32 %s15, 1
      %s21 = ssub.s32 %s15, 2
      %s28 = sadd.s32 1, %s23
      %p29 = scmp.ge.s32.totalorder %s28, 1
      %s30 = scalar_select %p29, 0, %s28
      %s31 = sadd.s32 1, %s22
      %s32 = scalar_select %p29, %s31, %s22
      %p33 = scmp.ge.s32.totalorder %s32, 2
      %s34 = scalar_select %p33, 0, %s32
      %s35 = ssub.s32 %s22, %s34
      %p36 = scmp.eq.s32.totalorder %s35, 0
      %s38 = sadd.s32 %s37, 1
      %s39 = scalar_select %p36, %s37, %s38
      %p42 = pneg %p36
      %p43 = scmp.eq.s32.totalorder %s15, 1
      %p44 = por %p42, %p43
      %p45 = scmp.ne.s32.totalorder %s37, %s40
      %p46 = scmp.eq.s32.totalorder %s15, 0
      %p47 = por %p45, %p46
      %p48 = scmp.ne.s32.totalorder %s37, %s40
      %p49 = scmp.eq.s32.totalorder %s20, 1
      %p50 = por %p48, %p49
      %p51 = scmp.ne.s32.totalorder %s40, %s41
      %p52 = scmp.eq.s32.totalorder %s20, 0
      %p53 = por %p51, %p52
      %p54 = scmp.ne.s32.totalorder %s40, %s41
      %p55 = scmp.eq.s32.totalorder %s21, 1
      %p56 = por %p54, %p55
      %p58 = scmp.ne.s32.totalorder %s41, %s57
      %p59 = scmp.eq.s32.totalorder %s21, 0
      %p60 = por %p58, %p59
      %s61 = ssub.s32 %s22, %s34
      %p62 = scmp.eq.s32.totalorder %s61, 0
      %s64 = sadd.s32 %s63, 1
      %s65 = scalar_select %p62, %s63, %s64
      %p68 = pneg %p62
      %p69 = scmp.eq.s32.totalorder %s15, 1
      %p70 = por %p68, %p69
      %p71 = scmp.ne.s32.totalorder %s63, %s66
      %p72 = scmp.eq.s32.totalorder %s15, 0
      %p73 = por %p71, %p72
      %p74 = scmp.ne.s32.totalorder %s63, %s66
      %p75 = scmp.eq.s32.totalorder %s20, 1
      %p76 = por %p74, %p75
      %p77 = scmp.ne.s32.totalorder %s66, %s67
      %p78 = scmp.eq.s32.totalorder %s20, 0
      %p79 = por %p77, %p78
      %p80 = scmp.ne.s32.totalorder %s66, %s67
      %p81 = scmp.eq.s32.totalorder %s21, 1
      %p82 = por %p80, %p81
      %p84 = scmp.ne.s32.totalorder %s67, %s83
      %p85 = scmp.eq.s32.totalorder %s21, 0
      %p86 = por %p84, %p85
      %s87 = ssub.s32 %s23, %s30
      %p88 = scmp.eq.s32.totalorder %s87, 0
      %s90 = sadd.s32 %s89, 1
      %s91 = scalar_select %p88, %s89, %s90
      %p94 = pneg %p88
      %p95 = scmp.eq.s32.totalorder %s15, 1
      %p96 = por %p94, %p95
      %p97 = scmp.ne.s32.totalorder %s89, %s92
      %p98 = scmp.eq.s32.totalorder %s15, 0
      %p99 = por %p97, %p98
      %p100 = scmp.ne.s32.totalorder %s89, %s92
      %p101 = scmp.eq.s32.totalorder %s20, 1
      %p102 = por %p100, %p101
      %p103 = scmp.ne.s32.totalorder %s92, %s93
      %p104 = scmp.eq.s32.totalorder %s20, 0
      %p105 = por %p103, %p104
      %p106 = scmp.ne.s32.totalorder %s92, %s93
      %p107 = scmp.eq.s32.totalorder %s21, 1
      %p108 = por %p106, %p107
      %p110 = scmp.ne.s32.totalorder %s93, %s109
      %p111 = scmp.eq.s32.totalorder %s21, 0
      %p112 = por %p110, %p111
      %s113 = ssub.s32 %s23, %s30
      %p114 = scmp.eq.s32.totalorder %s113, 0
      %s116 = sadd.s32 %s115, 1
      %s117 = scalar_select %p114, %s115, %s116
      %p120 = pneg %p114
      %p121 = scmp.eq.s32.totalorder %s15, 1
      %p122 = por %p120, %p121
      %p123 = scmp.ne.s32.totalorder %s115, %s118
      %p124 = scmp.eq.s32.totalorder %s15, 0
      %p125 = por %p123, %p124
      %p126 = scmp.ne.s32.totalorder %s115, %s118
      %p127 = scmp.eq.s32.totalorder %s20, 1
      %p128 = por %p126, %p127
      %p129 = scmp.ne.s32.totalorder %s118, %s119
      %p130 = scmp.eq.s32.totalorder %s20, 0
      %p131 = por %p129, %p130
      %p132 = scmp.ne.s32.totalorder %s118, %s119
      %p133 = scmp.eq.s32.totalorder %s21, 1
      %p134 = por %p132, %p133
      %p136 = scmp.ne.s32.totalorder %s119, %s135
      %p137 = scmp.eq.s32.totalorder %s21, 0
      %p138 = por %p136, %p137
      %s139 = ssub.s32 %s23, %s30
      %p140 = scmp.eq.s32.totalorder %s139, 0
      %s142 = sadd.s32 %s141, 1
      %s143 = scalar_select %p140, %s141, %s142
      %p146 = pneg %p140
      %p147 = scmp.eq.s32.totalorder %s15, 1
      %p148 = por %p146, %p147
      %p149 = scmp.ne.s32.totalorder %s141, %s144
      %p150 = scmp.eq.s32.totalorder %s15, 0
      %p151 = por %p149, %p150
      %p152 = scmp.ne.s32.totalorder %s141, %s144
      %p153 = scmp.eq.s32.totalorder %s20, 1
      %p154 = por %p152, %p153
      %p155 = scmp.ne.s32.totalorder %s144, %s145
      %p156 = scmp.eq.s32.totalorder %s20, 0
      %p157 = por %p155, %p156
      %p158 = scmp.ne.s32.totalorder %s144, %s145
      %p159 = scmp.eq.s32.totalorder %s21, 1
      %p160 = por %p158, %p159
      %p162 = scmp.ne.s32.totalorder %s145, %s161
      %p163 = scmp.eq.s32.totalorder %s21, 0
      %p164 = por %p162, %p163
      %s165 = ssub.s32 %s22, %s34
      %p166 = scmp.eq.s32.totalorder %s165, 0
      %s168 = sadd.s32 %s167, 1
      %s169 = scalar_select %p166, %s167, %s168
      %p172 = pneg %p166
      %p173 = scmp.eq.s32.totalorder %s15, 1
      %p174 = por %p172, %p173
      %p175 = scmp.ne.s32.totalorder %s167, %s170
      %p176 = scmp.eq.s32.totalorder %s15, 0
      %p177 = por %p175, %p176
      %p178 = scmp.ne.s32.totalorder %s167, %s170
      %p179 = scmp.eq.s32.totalorder %s20, 1
      %p180 = por %p178, %p179
      %p181 = scmp.ne.s32.totalorder %s170, %s171
      %p182 = scmp.eq.s32.totalorder %s20, 0
      %p183 = por %p181, %p182
      %p184 = scmp.ne.s32.totalorder %s170, %s171
      %p185 = scmp.eq.s32.totalorder %s21, 1
      %p186 = por %p184, %p185
      %p188 = scmp.ne.s32.totalorder %s171, %s187
      %p189 = scmp.eq.s32.totalorder %s21, 0
      %p190 = por %p188, %p189
      %p191 = scmp.le.s32.totalorder 1, %s15
      %p192 = scmp.lt.s32.totalorder %s15, 3
      %p193 = pnand %p191, %p192
      %p194 = pneg %p193
      // Predicated region
      $region9: #{tpu_custom_call.1} parent=5 // pred_check
        _
      $region10: #{tpu_custom_call.1} parent=5 // pred_check_branch
        %196 = sbr.rel (%p193) target = $region12
      $region11: #{tpu_custom_call.1} parent=5 // pred_region
        %s197 = ssub.s32 %s15, 1
        // Predicated region
        $region13: #{tpu_custom_call.1} parent=11 // pred_check
          %p198 = pneg %p105
        $region14: #{tpu_custom_call.1} parent=11 // pred_check_branch
          %200 = sbr.rel (%p198) target = $region16
        $region15: #{tpu_custom_call.1} parent=11 // pred_region
          %p201 = scmp.lt.s32.totalorder %s25, 0
          %s202 = scalar_select %p201, %s25, 0
          %s203 = scalar_lea.vmem %s2, %s202
        $region16: #{tpu_custom_call.1} parent=11 // pred_fallthru
          _
        // Predicated region
        $region17: #{tpu_custom_call.1} parent=11 // pred_check
          %p204 = pneg %p131
        $region18: #{tpu_custom_call.1} parent=11 // pred_check_branch
          %206 = sbr.rel (%p204) target = $region20
        $region19: #{tpu_custom_call.1} parent=11 // pred_region
          %p207 = scmp.lt.s32.totalorder %s25, 0
          %s208 = scalar_select %p207, %s25, 0
          %s209 = smul.addr %s208, 4
          %s210 = scalar_lea.vmem %s3, %s209
        $region20: #{tpu_custom_call.1} parent=11 // pred_fallthru
          _
        // Predicated region
        $region21: #{tpu_custom_call.1} parent=11 // pred_check
          %p211 = pneg %p157
        $region22: #{tpu_custom_call.1} parent=11 // pred_check_branch
          %213 = sbr.rel (%p211) target = $region24
        $region23: #{tpu_custom_call.1} parent=11 // pred_region
          %s214 = smul.u32 16, %s25
          %216 = vsyncadd [#allocation3], 0
          %s217 = smul.addr %s214, 4
          %s218 = scalar_lea.hbm %s4, %s217
          %s219 = sshll.u32 %s218, 4
          %s220 = int_to_ptr.hbm [resolvable:$true] %s219
          %s221 = sshll.u32 [#allocation2], 4
          %s222 = int_to_ptr.vmem [resolvable:$true] %s221
          %227 = dma.hbm_to_vmem [thread:$0]  %s220, 1024, %s222, [#allocation3], 64, 64, 4
        $region24: #{tpu_custom_call.1} parent=11 // pred_fallthru
          _
      $region12: #{tpu_custom_call.1} parent=5 // pred_fallthru
        _
      %p228 = scmp.lt.s32.totalorder %s15, 2
      // Predicated region
      $region25: #{tpu_custom_call.1} parent=5 // pred_check
        %p229 = pneg %p228
      $region26: #{tpu_custom_call.1} parent=5 // pred_check_branch
        %231 = sbr.rel (%p229) target = $region28
      $region27: #{tpu_custom_call.1} parent=5 // pred_region
        // Predicated region
        $region29: #{tpu_custom_call.1} parent=27 // pred_check
          %p232 = pneg %p47
        $region30: #{tpu_custom_call.1} parent=27 // pred_check_branch
          %234 = sbr.rel (%p232) target = $region32
        $region31: #{tpu_custom_call.1} parent=27 // pred_region
          %s235 = smul.u32 8, %s22
          %p236 = scmp.lt.s32.totalorder %s235, 15
          %s237 = scalar_select %p236, %s235, 15
          %s238 = smul.addr %s237, 4
          %s239 = scalar_lea.vmem %s0, %s238
          %s240 = smul.u32 8, %s22
        $region32: #{tpu_custom_call.1} parent=27 // pred_fallthru
          _
        // Predicated region
        $region33: #{tpu_custom_call.1} parent=27 // pred_check
          %p241 = pneg %p73
        $region34: #{tpu_custom_call.1} parent=27 // pred_check_branch
          %243 = sbr.rel (%p241) target = $region36
        $region35: #{tpu_custom_call.1} parent=27 // pred_region
          %s244 = smul.u32 8, %s22
          %p245 = scmp.lt.s32.totalorder %s244, 15
          %s246 = scalar_select %p245, %s244, 15
          %s247 = smul.addr %s246, 8
          %s248 = scalar_lea.vmem %s1, %s247
          %s249 = smul.u32 8, %s22
        $region36: #{tpu_custom_call.1} parent=27 // pred_fallthru
          _
      $region28: #{tpu_custom_call.1} parent=5 // pred_fallthru
        _
      %p250 = scmp.le.s32.totalorder 1, %s15
      %p251 = scmp.lt.s32.totalorder %s15, 3
      %p252 = pnand %p250, %p251
      %p253 = pneg %p252
      // Predicated region
      $region37: #{tpu_custom_call.1} parent=5 // pred_check
        _
      $region38: #{tpu_custom_call.1} parent=5 // pred_check_branch
        %255 = sbr.rel (%p252) target = $region40
      $region39: #{tpu_custom_call.1} parent=5 // pred_region
        %s256 = ssub.s32 %s15, 1
        // Predicated region
        $region41: #{tpu_custom_call.1} parent=39 // pred_check
          %p257 = pneg %p157
        $region42: #{tpu_custom_call.1} parent=39 // pred_check_branch
          %259 = sbr.rel (%p257) target = $region44
        $region43: #{tpu_custom_call.1} parent=39 // pred_region
          %261 = dma.done [#allocation3], 1024
        $region44: #{tpu_custom_call.1} parent=39 // pred_fallthru
          _
        %s262 = smul.u32 8, %s24
        %p263 = scmp.lt.s32.totalorder %s262, 15
        %s264 = scalar_select %p263, %s262, 15
        %s265 = smul.addr %s264, 4
        %s266 = scalar_lea.vmem %s0, %s265
        %p267 = pneg %p53
        %p268 = pneg %p50
        %s269 = smul.u32 8, %s24
        %p270 = scmp.lt.s32.totalorder %s269, 15
        %s271 = scalar_select %p270, %s269, 15
        %s272 = smul.addr %s271, 8
        %s273 = scalar_lea.vmem %s1, %s272
        %p274 = pneg %p79
        %p275 = pneg %p76
        %p276 = scmp.lt.s32.totalorder %s25, 0
        %s277 = scalar_select %p276, %s25, 0
        %s278 = scalar_lea.vmem %s2, %s277
        %p279 = pneg %p105
        %p280 = pneg %p102
        %p281 = scmp.lt.s32.totalorder %s25, 0
        %s282 = scalar_select %p281, %s25, 0
        %s283 = smul.addr %s282, 4
        %s284 = scalar_lea.vmem %s3, %s283
        %p285 = pneg %p131
        %p286 = pneg %p128
        %p287 = pneg %p157
        %p288 = pneg %p154
        %p289 = pneg %p183
        %p290 = pneg %p180
        %s291 = sand.u32 %s170, 1
        %s292 = scalar_lea.sflag [#allocation4], %s291
        %s293 = sand.u32 %s170, 1
        %s294 = smul.addr %s293, 64
        %s295 = scalar_lea.vmem [#allocation5], %s294
        %s296 = smul.u32 8, %s24
        %p297 = scmp.lt.s32.totalorder %s296, 15
        %s298 = scalar_select %p297, %s296, 15
        %s299 = smul.addr %s298, 4
        %s300 = scalar_lea.vmem %s0, %s299
        %s301 = smul.u32 8, %s24
        %s302 = smul.u32 8, %s24
        %p303 = scmp.lt.s32.totalorder %s302, 15
        %s304 = scalar_select %p303, %s302, 15
        %s305 = smul.addr %s304, 8
        %s306 = scalar_lea.vmem %s1, %s305
        %s307 = smul.u32 8, %s24
        %p308 = scmp.lt.s32.totalorder %s25, 0
        %s309 = scalar_select %p308, %s25, 0
        %s310 = scalar_lea.vmem %s2, %s309
        %p311 = scmp.lt.s32.totalorder %s25, 0
        %s312 = scalar_select %p311, %s25, 0
        %s313 = smul.addr %s312, 4
        %s314 = scalar_lea.vmem %s3, %s313
        %s315 = smul.u32 16, %s25
        %s316 = smul.u32 8, %s24
        %v317 = vld [vmem:[%s300] sm:$0xf]
        %v318 = vld [vmem:[%s300 + $0x4] sm:$0xf]
        %v319 = vld [vmem:[%s300 + $0x8] sm:$0xf]
        %v320 = vld [vmem:[%s300 + $0xc] sm:$0xf]
        %v321 = vld [vmem:[%s300 + $0x10] sm:$0xf]
        %v322 = vld [vmem:[%s300 + $0x14] sm:$0xf]
        %v323 = vld [vmem:[%s300 + $0x18] sm:$0xf]
        %v324 = vld [vmem:[%s300 + $0x1c] sm:$0xf]
        %v325 = vld [vmem:[%s314] sm:$0xf]
        %v326 = vld [vmem:[%s314 + $0x4] sm:$0xf]
        %v327 = vld [vmem:[%s314 + $0x8] sm:$0xf]
        %v328 = vld [vmem:[%s314 + $0xc] sm:$0xf]
        %v329 = vld [vmem:[%s314 + $0x10] sm:$0xf]
        %v330 = vld [vmem:[%s314 + $0x14] sm:$0xf]
        %v331 = vld [vmem:[%s314 + $0x18] sm:$0xf]
        %v332 = vld [vmem:[%s314 + $0x1c] sm:$0xf]
        %v333 = vld [vmem:[%s314 + $0x20] sm:$0xf]
        %v334 = vld [vmem:[%s314 + $0x24] sm:$0xf]
        %v335 = vld [vmem:[%s314 + $0x28] sm:$0xf]
        %v336 = vld [vmem:[%s314 + $0x2c] sm:$0xf]
        %v337 = vld [vmem:[%s314 + $0x30] sm:$0xf]
        %v338 = vld [vmem:[%s314 + $0x34] sm:$0xf]
        %v339 = vld [vmem:[%s314 + $0x38] sm:$0xf]
        %v340 = vld [vmem:[%s314 + $0x3c] sm:$0xf]
        %v349 = vunpack.c.l.b16 %v317
        %v350 = vunpack.c.l.b16 %v318
        %v351 = vunpack.c.l.b16 %v319
        %v352 = vunpack.c.l.b16 %v320
        %v353 = vunpack.c.l.b16 %v321
        %v354 = vunpack.c.l.b16 %v322
        %v355 = vunpack.c.l.b16 %v323
        %v356 = vunpack.c.l.b16 %v324
        %v357 = vpack.c.b16 %v350, %v349
        %v358 = vpack.c.b16 %v352, %v351
        %v359 = vpack.c.b16 %v354, %v353
        %v360 = vpack.c.b16 %v356, %v355
        %v381 = vunpack.c.l.b16 %v325
        %v382 = vunpack.c.l.b16 %v326
        %v383 = vunpack.c.l.b16 %v327
        %v384 = vunpack.c.l.b16 %v328
        %v385 = vunpack.c.l.b16 %v329
        %v386 = vunpack.c.l.b16 %v330
        %v387 = vunpack.c.l.b16 %v331
        %v388 = vunpack.c.l.b16 %v332
        %v389 = vunpack.c.l.b16 %v333
        %v390 = vunpack.c.l.b16 %v334
        %v391 = vunpack.c.l.b16 %v335
        %v392 = vunpack.c.l.b16 %v336
        %v393 = vunpack.c.l.b16 %v337
        %v394 = vunpack.c.l.b16 %v338
        %v395 = vunpack.c.l.b16 %v339
        %v396 = vunpack.c.l.b16 %v340
        %v397 = vpack.c.b16 %v382, %v381
        %v398 = vpack.c.b16 %v384, %v383
        %v399 = vpack.c.b16 %v386, %v385
        %v400 = vpack.c.b16 %v388, %v387
        %v401 = vpack.c.b16 %v390, %v389
        %v402 = vpack.c.b16 %v392, %v391
        %v403 = vpack.c.b16 %v394, %v393
        %v404 = vpack.c.b16 %v396, %v395
        %413 = vmatpush.bf16.msra.mxu0 %v404
        %414 = vmatpush.bf16.msra.mxu0 %v403
        %415 = vmatpush.bf16.msra.mxu0 %v402
        %416 = vmatpush.bf16.msra.mxu0 %v401
        %417 = vmatpush.bf16.msra.mxu0 %v400
        %418 = vmatpush.bf16.msra.mxu0 %v399
        %419 = vmatpush.bf16.msra.mxu0 %v398
        %420 = vmatpush.bf16.msra.mxu0 %v397
        %421 = vmatmul.bf16.gmra.mxu0 %v357
        %v422 = vpop.f32.mrf.mxu0
        %v423 = vadd.f32 0.0, %v422
        %v424 = vpop.f32.mrf.mxu0
        %v425 = vadd.f32 0.0, %v424
        %426 = vmatmul.bf16.gmra.mxu0 %v358
        %v427 = vpop.f32.mrf.mxu0
        %v428 = vadd.f32 0.0, %v427
        %v429 = vpop.f32.mrf.mxu0
        %v430 = vadd.f32 0.0, %v429
        %431 = vmatmul.bf16.gmra.mxu0 %v359
        %v432 = vpop.f32.mrf.mxu0
        %v433 = vadd.f32 0.0, %v432
        %v434 = vpop.f32.mrf.mxu0
        %v435 = vadd.f32 0.0, %v434
        %436 = vmatmul.bf16.gmra.mxu0 %v360
        %v437 = vpop.f32.mrf.mxu0
        %v438 = vadd.f32 0.0, %v437
        %v439 = vpop.f32.mrf.mxu0
        %v440 = vadd.f32 0.0, %v439
        %441 = vdwg.mxu0
        %v442 = vld [vmem:[%s310] sm:$0x1]
        %v443 = vld [vmem:[%s306] sm:$0xff]
        %v444 = vld [vmem:[%s306 + $0x8] sm:$0xff]
        %v445 = vld [vmem:[%s306 + $0x10] sm:$0xff]
        %v446 = vld [vmem:[%s306 + $0x18] sm:$0xff]
        %v447 = vld [vmem:[%s306 + $0x20] sm:$0xff]
        %v448 = vld [vmem:[%s306 + $0x28] sm:$0xff]
        %v449 = vld [vmem:[%s306 + $0x30] sm:$0xff]
        %v450 = vld [vmem:[%s306 + $0x38] sm:$0xff]
        %v451 = vperm.slane %v442, 0
        %452 = vset.pattern.permute.xlu0 0
        %453 = vperm.xlu0 %452, %v443
        %v454 = vpop.permute.xlu0 %453
        %455 = vset.pattern.permute.xlu0 0
        %456 = vperm.xlu0 %455, %v444
        %v457 = vpop.permute.xlu0 %456
        %458 = vset.pattern.permute.xlu0 0
        %459 = vperm.xlu0 %458, %v445
        %v460 = vpop.permute.xlu0 %459
        %461 = vset.pattern.permute.xlu0 0
        %462 = vperm.xlu0 %461, %v446
        %v463 = vpop.permute.xlu0 %462
        %464 = vset.pattern.permute.xlu0 0
        %465 = vperm.xlu0 %464, %v447
        %v466 = vpop.permute.xlu0 %465
        %467 = vset.pattern.permute.xlu0 0
        %468 = vperm.xlu0 %467, %v448
        %v469 = vpop.permute.xlu0 %468
        %470 = vset.pattern.permute.xlu0 0
        %471 = vperm.xlu0 %470, %v449
        %v472 = vpop.permute.xlu0 %471
        %473 = vset.pattern.permute.xlu0 0
        %474 = vperm.xlu0 %473, %v450
        %v475 = vpop.permute.xlu0 %474
        %vm476 = vcmp.lt.s32.totalorder %v451, %v454
        %vm477 = vcmp.lt.s32.totalorder %v451, %v457
        %vm478 = vcmp.lt.s32.totalorder %v451, %v460
        %vm479 = vcmp.lt.s32.totalorder %v451, %v463
        %vm480 = vcmp.lt.s32.totalorder %v451, %v466
        %vm481 = vcmp.lt.s32.totalorder %v451, %v469
        %vm482 = vcmp.lt.s32.totalorder %v451, %v472
        %vm483 = vcmp.lt.s32.totalorder %v451, %v475
        %v484 = vsel %vm476, %v423, 0.0
        %v485 = vsel %vm477, %v425, 0.0
        %v486 = vsel %vm478, %v428, 0.0
        %v487 = vsel %vm479, %v430, 0.0
        %v488 = vsel %vm480, %v433, 0.0
        %v489 = vsel %vm481, %v435, 0.0
        %v490 = vsel %vm482, %v438, 0.0
        %v491 = vsel %vm483, %v440, 0.0
        %v492 = vpack.c.bf16 %v485, %v484
        %v493 = vpack.c.bf16 %v487, %v486
        %v494 = vpack.c.bf16 %v489, %v488
        %v495 = vpack.c.bf16 %v491, %v490
        %v496 = vld [vmem:[#allocation2] sm:$0xf]
        %v497 = vld [vmem:[#allocation2 + $0x4] sm:$0xf]
        %v498 = vld [vmem:[#allocation2 + $0x8] sm:$0xf]
        %v499 = vld [vmem:[#allocation2 + $0xc] sm:$0xf]
        %v500 = vld [vmem:[#allocation2 + $0x10] sm:$0xf]
        %v501 = vld [vmem:[#allocation2 + $0x14] sm:$0xf]
        %v502 = vld [vmem:[#allocation2 + $0x18] sm:$0xf]
        %v503 = vld [vmem:[#allocation2 + $0x1c] sm:$0xf]
        %v504 = vld [vmem:[#allocation2 + $0x20] sm:$0xf]
        %v505 = vld [vmem:[#allocation2 + $0x24] sm:$0xf]
        %v506 = vld [vmem:[#allocation2 + $0x28] sm:$0xf]
        %v507 = vld [vmem:[#allocation2 + $0x2c] sm:$0xf]
        %v508 = vld [vmem:[#allocation2 + $0x30] sm:$0xf]
        %v509 = vld [vmem:[#allocation2 + $0x34] sm:$0xf]
        %v510 = vld [vmem:[#allocation2 + $0x38] sm:$0xf]
        %v511 = vld [vmem:[#allocation2 + $0x3c] sm:$0xf]
        %v528 = vunpack.c.l.b16 %v496
        %v529 = vunpack.c.l.b16 %v497
        %v530 = vunpack.c.l.b16 %v498
        %v531 = vunpack.c.l.b16 %v499
        %v532 = vunpack.c.l.b16 %v500
        %v533 = vunpack.c.l.b16 %v501
        %v534 = vunpack.c.l.b16 %v502
        %v535 = vunpack.c.l.b16 %v503
        %v536 = vunpack.c.l.b16 %v504
        %v537 = vunpack.c.l.b16 %v505
        %v538 = vunpack.c.l.b16 %v506
        %v539 = vunpack.c.l.b16 %v507
        %v540 = vunpack.c.l.b16 %v508
        %v541 = vunpack.c.l.b16 %v509
        %v542 = vunpack.c.l.b16 %v510
        %v543 = vunpack.c.l.b16 %v511
        %v544 = vpack.c.b16 %v529, %v528
        %v545 = vpack.c.b16 %v531, %v530
        %v546 = vpack.c.b16 %v533, %v532
        %v547 = vpack.c.b16 %v535, %v534
        %v548 = vpack.c.b16 %v537, %v536
        %v549 = vpack.c.b16 %v539, %v538
        %v550 = vpack.c.b16 %v541, %v540
        %v551 = vpack.c.b16 %v543, %v542
        %560 = vmatpush.bf16.msra.mxu0 %v551
        %561 = vmatpush.bf16.msra.mxu0 %v550
        %562 = vmatpush.bf16.msra.mxu0 %v549
        %563 = vmatpush.bf16.msra.mxu0 %v548
        %564 = vmatpush.bf16.msra.mxu0 %v547
        %565 = vmatpush.bf16.msra.mxu0 %v546
        %566 = vmatpush.bf16.msra.mxu0 %v545
        %567 = vmatpush.bf16.msra.mxu0 %v544
        %568 = vmatmul.bf16.gmra.mxu0 %v492
        %v569 = vpop.f32.mrf.mxu0
        %v570 = vadd.f32 0.0, %v569
        %v571 = vpop.f32.mrf.mxu0
        %v572 = vadd.f32 0.0, %v571
        %573 = vmatmul.bf16.gmra.mxu0 %v493
        %v574 = vpop.f32.mrf.mxu0
        %v575 = vadd.f32 0.0, %v574
        %v576 = vpop.f32.mrf.mxu0
        %v577 = vadd.f32 0.0, %v576
        %578 = vmatmul.bf16.gmra.mxu0 %v494
        %v579 = vpop.f32.mrf.mxu0
        %v580 = vadd.f32 0.0, %v579
        %v581 = vpop.f32.mrf.mxu0
        %v582 = vadd.f32 0.0, %v581
        %583 = vmatmul.bf16.gmra.mxu0 %v495
        %v584 = vpop.f32.mrf.mxu0
        %v585 = vadd.f32 0.0, %v584
        %v586 = vpop.f32.mrf.mxu0
        %v587 = vadd.f32 0.0, %v586
        %588 = vdwg.mxu0
        %589 = vst [vmem:[%s295] sm:$0xff] %v570
        %590 = vst [vmem:[%s295 + $0x8] sm:$0xff] %v572
        %591 = vst [vmem:[%s295 + $0x10] sm:$0xff] %v575
        %592 = vst [vmem:[%s295 + $0x18] sm:$0xff] %v577
        %593 = vst [vmem:[%s295 + $0x20] sm:$0xff] %v580
        %594 = vst [vmem:[%s295 + $0x28] sm:$0xff] %v582
        %595 = vst [vmem:[%s295 + $0x30] sm:$0xff] %v585
        %596 = vst [vmem:[%s295 + $0x38] sm:$0xff] %v587
        %s597 = sand.u32 %s170, 1
        %s598 = scalar_lea.sflag [#allocation4], %s597
        %s599 = sand.u32 %s170, 1
        %s600 = smul.addr %s599, 64
        %s601 = scalar_lea.vmem [#allocation5], %s600
        // Predicated region
        $region45: #{tpu_custom_call.1} parent=39 // pred_check
          %p602 = pneg %p180
        $region46: #{tpu_custom_call.1} parent=39 // pred_check_branch
          %604 = sbr.rel (%p602) target = $region48
        $region47: #{tpu_custom_call.1} parent=39 // pred_region
          %s605 = smul.u32 8, %s24
          %607 = vsyncadd %s598, 0
          %s608 = smul.addr %s605, 8
          %s609 = scalar_lea.hbm %s5, %s608
          %s610 = sshll.u32 %s601, 4
          %s611 = int_to_ptr.vmem [resolvable:$true] %s610
          %s612 = sshll.u32 %s609, 4
          %s613 = int_to_ptr.hbm [resolvable:$true] %s612
          %618 = dma.vmem_to_hbm [thread:$0]  %s611, 1024, %s613, %s598, 128, 128, 8
        $region48: #{tpu_custom_call.1} parent=39 // pred_fallthru
          _
      $region40: #{tpu_custom_call.1} parent=5 // pred_fallthru
        _
      %p619 = scmp.le.s32.totalorder 2, %s15
      // Predicated region
      $region49: #{tpu_custom_call.1} parent=5 // pred_check
        %p620 = pneg %p619
      $region50: #{tpu_custom_call.1} parent=5 // pred_check_branch
        %622 = sbr.rel (%p620) target = $region52
      $region51: #{tpu_custom_call.1} parent=5 // pred_region
        %s623 = ssub.s32 %s15, 2
        // Predicated region
        $region53: #{tpu_custom_call.1} parent=51 // pred_check
          %p624 = pneg %p186
        $region54: #{tpu_custom_call.1} parent=51 // pred_check_branch
          %626 = sbr.rel (%p624) target = $region56
        $region55: #{tpu_custom_call.1} parent=51 // pred_region
          %s627 = sand.u32 %s171, 1
          %s628 = scalar_lea.sflag [#allocation4], %s627
          %s629 = sand.u32 %s171, 1
          %s630 = smul.addr %s629, 64
          %s631 = scalar_lea.vmem [#allocation5], %s630
          %633 = dma.done %s628, 1024
        $region56: #{tpu_custom_call.1} parent=51 // pred_fallthru
          _
      $region52: #{tpu_custom_call.1} parent=5 // pred_fallthru
        _
    $region6: #{tpu_custom_call.1} parent=1 // loop_footer
      %s19 = sadd.s32 1, %s15
    $region7: #{tpu_custom_call.1} parent=1 // loop_footer_branch
      %14 = sbr.rel target = $region3
    $region8: #{tpu_custom_call.1} parent=1 // loop_exit
      _
    %634 = vsyncpa [#allocation3], 1
    %s635 = scalar_lea.sflag [#allocation3], 1
    %636 = vsyncpa %s635, 1
    %637 = vsyncpa [#allocation4], 1
    %s638 = scalar_lea.sflag [#allocation4], 1
    %639 = vsyncpa %s638, 1

</llo_original>
